<compile_context>
chip_gen: v7x
topology: tpu7x:2x2x1
jax: 0.10.0
libtpu: 0.0.40
codegen_flags: <defaults>
</compile_context>

<pallas_src>
import functools

import jax
import jax.numpy as jnp
from jax.experimental import pallas as pl
from jax.experimental.pallas import tpu as pltpu

_EPS = 1e-12            # torch.nn.functional.normalize default eps
_EPS2 = _EPS * _EPS     # clamp applied to the sum-of-squares (pre-rsqrt)


def _byol_loss_kernel(op1_ref, op2_ref, tp1_ref, tp2_ref, out_ref, *, inv_b):
    """One batch tile of the fused BYOL loss.

    Per row:
      a_i = <o1_i, t2_i> * rsqrt(max(|o1_i|^2, eps^2)) * rsqrt(max(|t2_i|^2, eps^2))
      b_i = <o2_i, t1_i> * rsqrt(max(|o2_i|^2, eps^2)) * rsqrt(max(|t1_i|^2, eps^2))
      loss_i = 0.5*(2 - 2 a_i) + 0.5*(2 - 2 b_i) = 2 - (a_i + b_i)
    The (1,1) output block is resident across the batch-tile grid axis and
    accumulates sum_i (a_i + b_i); the last step finalizes 2 - sum / B.
    """
    step = pl.program_id(0)

    @pl.when(step == 0)
    def _init():
        out_ref[...] = jnp.zeros_like(out_ref)

    # Inputs may arrive as bf16; always accumulate in f32 (required on v5e,
    # and bf16 would only be worth shipping to halve HBM traffic anyway).
    o1 = op1_ref[...].astype(jnp.float32)
    o2 = op2_ref[...].astype(jnp.float32)
    t1 = tp1_ref[...].astype(jnp.float32)  # .detach() is a forward no-op
    t2 = tp2_ref[...].astype(jnp.float32)

    # Six lane (last-dim) reductions, kept 2-D (TB, 1) for layout friendliness.
    n1 = jnp.sum(o1 * o1, axis=-1, keepdims=True)
    n2 = jnp.sum(o2 * o2, axis=-1, keepdims=True)
    m1 = jnp.sum(t1 * t1, axis=-1, keepdims=True)
    m2 = jnp.sum(t2 * t2, axis=-1, keepdims=True)
    d1 = jnp.sum(o1 * t2, axis=-1, keepdims=True)
    d2 = jnp.sum(o2 * t1, axis=-1, keepdims=True)

    # rsqrt executes on the EUP slot; clamp each sum-of-squares separately so
    # near-zero rows match torch's x / max(||x||, eps) exactly.
    a = d1 * jax.lax.rsqrt(jnp.maximum(n1, _EPS2)) \
           * jax.lax.rsqrt(jnp.maximum(m2, _EPS2))
    b = d2 * jax.lax.rsqrt(jnp.maximum(n2, _EPS2)) \
           * jax.lax.rsqrt(jnp.maximum(m1, _EPS2))

    # (TB, 1) -> (1, 1) sublane reduce, accumulated into the resident output.
    out_ref[...] += jnp.sum(a + b, axis=0, keepdims=True)

    @pl.when(step == pl.num_programs(0) - 1)
    def _finalize():
        out_ref[...] = 2.0 - out_ref[...] * inv_b


def _pick_block_b(B, D, vmem_budget_bytes=8 * 1024 * 1024):
    """Largest batch tile whose 4 double-buffered f32 operands fit the budget.

    Conservative budget keeps the kernel inside the default scoped-VMEM limit
    on all of v5e / v6e / v7x (v7x only has 64 MiB physical VMEM).
    """
    bytes_per_row = 4 * D * 4 * 2          # 4 operands * f32 * double buffer
    max_rows = max(8, vmem_budget_bytes // bytes_per_row)
    if B <= max_rows:
        return B                           # whole batch resident -> one grid step
    tb = min((max_rows // 8) * 8, B)
    while tb > 8 and B % tb:
        tb -= 8                            # multiple of 8 that divides B evenly
    # Ragged last tiles would need masking; fall back to full-resident instead.
    return tb if B % tb == 0 else B


def byol_loss(opred1, opred2, tproj1, tproj2, *, block_b=None):
    """Pallas implementation of BYOL_Loss.forward. Inputs: (B, D) arrays."""
    B, D = opred1.shape
    tb = block_b if block_b is not None else _pick_block_b(B, D)
    assert B % tb == 0, (B, tb)
    num_tiles = B // tb

    in_spec = pl.BlockSpec((tb, D), lambda i: (i, 0))
    out_spec = pl.BlockSpec((1, 1), lambda i: (0, 0))   # resident accumulator

    out = pl.pallas_call(
        functools.partial(_byol_loss_kernel, inv_b=1.0 / B),
        out_shape=jax.ShapeDtypeStruct((1, 1), jnp.float32),
        grid=(num_tiles,),
        in_specs=[in_spec, in_spec, in_spec, in_spec],
        out_specs=out_spec,
        compiler_params=pltpu.CompilerParams(
            dimension_semantics=("arbitrary",)),   # reduction over batch tiles
    )(opred1, opred2, tproj1, tproj2)
    return out[0, 0]


def byol_loss_ref(opred1, opred2, tproj1, tproj2):
    """Pure-JAX reference mirroring the PyTorch module (for correctness check)."""
    def norm(x):
        n = jnp.linalg.norm(x, axis=-1, keepdims=True)
        return x / jnp.maximum(n, _EPS)
    o1, o2 = norm(opred1), norm(opred2)
    t1, t2 = norm(tproj1), norm(tproj2)
    lp1 = 2.0 - 2.0 * jnp.sum(o1 * t2, axis=-1)
    lp2 = 2.0 - 2.0 * jnp.sum(o2 * t1, axis=-1)
    return jnp.mean(0.5 * lp1 + 0.5 * lp2)


if __name__ == "__main__":
    # BYOL_Loss has no parameters; only deterministic example inputs are needed.
    key = jax.random.PRNGKey(0)
    k1, k2, k3, k4 = jax.random.split(key, 4)
    B, D = 8, 128  # small: batch of 8 embeddings, 128-dim projection
    opred1 = jax.random.normal(k1, (B, D), dtype=jnp.float32)
    opred2 = jax.random.normal(k2, (B, D), dtype=jnp.float32)
    tproj1 = jax.random.normal(k3, (B, D), dtype=jnp.float32)
    tproj2 = jax.random.normal(k4, (B, D), dtype=jnp.float32)

    loss = jax.block_until_ready(byol_loss(opred1, opred2, tproj1, tproj2))
    ref = jax.block_until_ready(byol_loss_ref(opred1, opred2, tproj1, tproj2))
    assert jnp.allclose(loss, ref, atol=1e-5, rtol=1e-5), (loss, ref)

    # Also exercise the batch-tiled (gridded accumulator) path used for large B.
    kb = jax.random.split(jax.random.PRNGKey(1), 4)
    B2, D2 = 32, 256
    big = [jax.random.normal(k, (B2, D2), dtype=jnp.float32) for k in kb]
    loss2 = jax.block_until_ready(byol_loss(*big, block_b=8))
    ref2 = jax.block_until_ready(byol_loss_ref(*big))
    assert jnp.allclose(loss2, ref2, atol=1e-5, rtol=1e-5), (loss2, ref2)

    print("KERNEL_OK")
</pallas_src>

<mosaic_0001>
module attributes {stable_mosaic.version = 11 : i64} {
  func.func @_byol_loss_kernel(%arg0: i32, %arg1: memref<8x128xf32, #tpu.memory_space<vmem>>, %arg2: memref<8x128xf32, #tpu.memory_space<vmem>>, %arg3: memref<8x128xf32, #tpu.memory_space<vmem>>, %arg4: memref<8x128xf32, #tpu.memory_space<vmem>>, %arg5: memref<1x1xf32, #tpu.memory_space<vmem>>) attributes {dimension_semantics = [#tpu.dimension_semantics<arbitrary>], iteration_bounds = array<i64: 1>, scalar_prefetch = 0 : i64, scratch_operands = 0 : i64, tpu.core_type = #tpu.core_type<tc>, window_params = [{transform_indices = @transform_0, window_bounds = array<i64: 8, 128>}, {transform_indices = @transform_1, window_bounds = array<i64: 8, 128>}, {transform_indices = @transform_2, window_bounds = array<i64: 8, 128>}, {transform_indices = @transform_3, window_bounds = array<i64: 8, 128>}, {pipeline_mode = #tpu.pipeline_mode<synchronous>, transform_indices = @transform_4, window_bounds = array<i64: 1, 1>}]} {
    %c0_i32 = arith.constant 0 : i32
    %0 = arith.cmpi eq, %arg0, %c0_i32 : i32
    %1 = arith.extui %0 : i1 to i32
    %c0_i32_0 = arith.constant 0 : i32
    %2 = arith.cmpi ne, %1, %c0_i32_0 : i32
    scf.if %2 {
      %cst_24 = arith.constant 0.000000e+00 : f32
      %50 = vector.broadcast %cst_24 : f32 to vector<1x1xf32>
      %c0_25 = arith.constant 0 : index
      %c0_26 = arith.constant 0 : index
      %51 = vector.load %arg5[%c0_25, %c0_26] : memref<1x1xf32, #tpu.memory_space<vmem>>, vector<1x1xf32>
      tpu.vector_store %arg5[%c0_25, %c0_26], %50 {strides = array<i32>} : memref<1x1xf32, #tpu.memory_space<vmem>>, vector<1x1xf32>,
    } else {
    }
    %c0 = arith.constant 0 : index
    %c0_1 = arith.constant 0 : index
    %3 = vector.load %arg1[%c0, %c0_1] : memref<8x128xf32, #tpu.memory_space<vmem>>, vector<8x128xf32>
    %c0_2 = arith.constant 0 : index
    %c0_3 = arith.constant 0 : index
    %4 = vector.load %arg2[%c0_2, %c0_3] : memref<8x128xf32, #tpu.memory_space<vmem>>, vector<8x128xf32>
    %c0_4 = arith.constant 0 : index
    %c0_5 = arith.constant 0 : index
    %5 = vector.load %arg3[%c0_4, %c0_5] : memref<8x128xf32, #tpu.memory_space<vmem>>, vector<8x128xf32>
    %c0_6 = arith.constant 0 : index
    %c0_7 = arith.constant 0 : index
    %6 = vector.load %arg4[%c0_6, %c0_7] : memref<8x128xf32, #tpu.memory_space<vmem>>, vector<8x128xf32>
    %7 = arith.mulf %3, %3 : vector<8x128xf32>
    %cst = arith.constant dense<0.000000e+00> : vector<8xf32>
    %8 = vector.multi_reduction <add>, %7, %cst [1] : vector<8x128xf32> to vector<8xf32>
    %9 = vector.shape_cast %8 : vector<8xf32> to vector<8x1xf32>
    %10 = arith.mulf %4, %4 : vector<8x128xf32>
    %cst_8 = arith.constant dense<0.000000e+00> : vector<8xf32>
    %11 = vector.multi_reduction <add>, %10, %cst_8 [1] : vector<8x128xf32> to vector<8xf32>
    %12 = vector.shape_cast %11 : vector<8xf32> to vector<8x1xf32>
    %13 = arith.mulf %5, %5 : vector<8x128xf32>
    %cst_9 = arith.constant dense<0.000000e+00> : vector<8xf32>
    %14 = vector.multi_reduction <add>, %13, %cst_9 [1] : vector<8x128xf32> to vector<8xf32>
    %15 = vector.shape_cast %14 : vector<8xf32> to vector<8x1xf32>
    %16 = arith.mulf %6, %6 : vector<8x128xf32>
    %cst_10 = arith.constant dense<0.000000e+00> : vector<8xf32>
    %17 = vector.multi_reduction <add>, %16, %cst_10 [1] : vector<8x128xf32> to vector<8xf32>
    %18 = vector.shape_cast %17 : vector<8xf32> to vector<8x1xf32>
    %19 = arith.mulf %3, %6 : vector<8x128xf32>
    %cst_11 = arith.constant dense<0.000000e+00> : vector<8xf32>
    %20 = vector.multi_reduction <add>, %19, %cst_11 [1] : vector<8x128xf32> to vector<8xf32>
    %21 = vector.shape_cast %20 : vector<8xf32> to vector<8x1xf32>
    %22 = arith.mulf %4, %5 : vector<8x128xf32>
    %cst_12 = arith.constant dense<0.000000e+00> : vector<8xf32>
    %23 = vector.multi_reduction <add>, %22, %cst_12 [1] : vector<8x128xf32> to vector<8xf32>
    %24 = vector.shape_cast %23 : vector<8xf32> to vector<8x1xf32>
    %cst_13 = arith.constant 1.000000e-24 : f32
    %25 = vector.broadcast %cst_13 : f32 to vector<8x1xf32>
    %26 = arith.maximumf %9, %25 : vector<8x1xf32>
    %27 = math.rsqrt %26 : vector<8x1xf32>
    %28 = arith.mulf %21, %27 : vector<8x1xf32>
    %cst_14 = arith.constant 1.000000e-24 : f32
    %29 = vector.broadcast %cst_14 : f32 to vector<8x1xf32>
    %30 = arith.maximumf %18, %29 : vector<8x1xf32>
    %31 = math.rsqrt %30 : vector<8x1xf32>
    %32 = arith.mulf %28, %31 : vector<8x1xf32>
    %cst_15 = arith.constant 1.000000e-24 : f32
    %33 = vector.broadcast %cst_15 : f32 to vector<8x1xf32>
    %34 = arith.maximumf %12, %33 : vector<8x1xf32>
    %35 = math.rsqrt %34 : vector<8x1xf32>
    %36 = arith.mulf %24, %35 : vector<8x1xf32>
    %cst_16 = arith.constant 1.000000e-24 : f32
    %37 = vector.broadcast %cst_16 : f32 to vector<8x1xf32>
    %38 = arith.maximumf %15, %37 : vector<8x1xf32>
    %39 = math.rsqrt %38 : vector<8x1xf32>
    %40 = arith.mulf %36, %39 : vector<8x1xf32>
    %c0_17 = arith.constant 0 : index
    %c0_18 = arith.constant 0 : index
    %41 = vector.load %arg5[%c0_17, %c0_18] : memref<1x1xf32, #tpu.memory_space<vmem>>, vector<1x1xf32>
    %42 = arith.addf %32, %40 : vector<8x1xf32>
    %cst_19 = arith.constant dense<0.000000e+00> : vector<1xf32>
    %43 = vector.multi_reduction <add>, %42, %cst_19 [0] : vector<8x1xf32> to vector<1xf32>
    %44 = vector.shape_cast %43 : vector<1xf32> to vector<1x1xf32>
    %45 = arith.addf %41, %44 : vector<1x1xf32>
    %c0_20 = arith.constant 0 : index
    %c0_21 = arith.constant 0 : index
    %46 = vector.load %arg5[%c0_20, %c0_21] : memref<1x1xf32, #tpu.memory_space<vmem>>, vector<1x1xf32>
    tpu.vector_store %arg5[%c0_20, %c0_21], %45 {strides = array<i32>} : memref<1x1xf32, #tpu.memory_space<vmem>>, vector<1x1xf32>,
    %c0_i32_22 = arith.constant 0 : i32
    %47 = arith.cmpi eq, %arg0, %c0_i32_22 : i32
    %48 = arith.extui %47 : i1 to i32
    %c0_i32_23 = arith.constant 0 : i32
    %49 = arith.cmpi ne, %48, %c0_i32_23 : i32
    scf.if %49 {
      %c0_24 = arith.constant 0 : index
      %c0_25 = arith.constant 0 : index
      %50 = vector.load %arg5[%c0_24, %c0_25] : memref<1x1xf32, #tpu.memory_space<vmem>>, vector<1x1xf32>
      %cst_26 = arith.constant 1.250000e-01 : f32
      %51 = vector.broadcast %cst_26 : f32 to vector<1x1xf32>
      %52 = arith.mulf %50, %51 : vector<1x1xf32>
      %cst_27 = arith.constant 2.000000e+00 : f32
      %53 = vector.broadcast %cst_27 : f32 to vector<1x1xf32>
      %54 = arith.subf %53, %52 : vector<1x1xf32>
      %c0_28 = arith.constant 0 : index
      %c0_29 = arith.constant 0 : index
      %55 = vector.load %arg5[%c0_28, %c0_29] : memref<1x1xf32, #tpu.memory_space<vmem>>, vector<1x1xf32>
      tpu.vector_store %arg5[%c0_28, %c0_29], %54 {strides = array<i32>} : memref<1x1xf32, #tpu.memory_space<vmem>>, vector<1x1xf32>,
    } else {
    }
    return
  }
  func.func @transform_0(%arg0: i32) -> (i32, i32) {
    %c0_i32 = arith.constant 0 : i32
    %c0_i32_0 = arith.constant 0 : i32
    return %arg0, %c0_i32 : i32, i32
  }
  func.func @transform_1(%arg0: i32) -> (i32, i32) {
    %c0_i32 = arith.constant 0 : i32
    %c0_i32_0 = arith.constant 0 : i32
    return %arg0, %c0_i32 : i32, i32
  }
  func.func @transform_2(%arg0: i32) -> (i32, i32) {
    %c0_i32 = arith.constant 0 : i32
    %c0_i32_0 = arith.constant 0 : i32
    return %arg0, %c0_i32 : i32, i32
  }
  func.func @transform_3(%arg0: i32) -> (i32, i32) {
    %c0_i32 = arith.constant 0 : i32
    %c0_i32_0 = arith.constant 0 : i32
    return %arg0, %c0_i32 : i32, i32
  }
  func.func @transform_4(%arg0: i32) -> (i32, i32) {
    %c0_i32 = arith.constant 0 : i32
    %c0_i32_0 = arith.constant 0 : i32
    %c0_i32_1 = arith.constant 0 : i32
    return %c0_i32, %c0_i32_0 : i32, i32
  }
}

</mosaic_0001>

<llo_original>
// kernel: tpu_custom_call.1
$region0: #{tpu_custom_call.1}
  #allocation0 [shape = 'u32[]', space=smem, size = 0x4, offset = 0x4, fixed_abs, tag = 'smem constant byte address 0x4 - core index']
  #allocation1 [shape = 'u32[144,128]{1,0:T(1,128)}', space=vmem, size = 0x12000, scoped, tag = 'internal scratch']
  %s0 = inlined_call_operand.hbm [shape: f32[8,128], index: 0, kind: input, shape index: {}]
  %s1 = inlined_call_operand.hbm [shape: f32[8,128], index: 1, kind: input, shape index: {}]
  %s2 = inlined_call_operand.hbm [shape: f32[8,128], index: 2, kind: input, shape index: {}]
  %s3 = inlined_call_operand.vmem [shape: f32[8,128], index: 3, kind: input, shape index: {}]
  %s4 = inlined_call_operand.hbm [shape: f32[1,1], index: 4, kind: output, shape index: {}]
  %s5 = sld [smem:[#allocation0]]
  $region46: #{tpu_custom_call.1} parent=0
    _
  %s7 = ssub.s32 1, %s5
  %s8 = scalar_select 0, %s7, %s5
  $region1: #{tpu_custom_call.1} parent=0
    #allocation2 [shape = 'u8[4096]{0}', space=vmem, size = 0x1000, scoped, tag = 'input window, operand 0, single buffered']
    #allocation3 [shape = 's32[1]{0}', space=sflag, size = 0x4, scoped, tag = 'scoped memory for tpu_custom_call.1']
    #allocation4 [shape = 's32[1]{0}', space=sflag, size = 0x4, scoped, tag = 'scoped memory for tpu_custom_call.1']
    #allocation5 [shape = 'u8[4096]{0}', space=vmem, size = 0x1000, scoped, tag = 'input window, operand 1, single buffered']
    #allocation6 [shape = 's32[1]{0}', space=sflag, size = 0x4, scoped, tag = 'scoped memory for tpu_custom_call.1']
    #allocation7 [shape = 'u8[4096]{0}', space=vmem, size = 0x1000, scoped, tag = 'input window, operand 2, single buffered']
    #allocation8 [shape = 'u8[512]{0}', space=vmem, size = 0x400, scoped, tag = 'output window, operand 0, single buffered']
    %9 = vsyncpa [#allocation3], 0
    %10 = vsyncpa [#allocation6], 0
    %11 = vsyncpa [#allocation4], 0
    // Predicated region
    $region2: #{tpu_custom_call.1} parent=1 // pred_check
      _
    $region3: #{tpu_custom_call.1} parent=1 // pred_check_branch
      %13 = sbr.rel (0) target = $region5
    $region4: #{tpu_custom_call.1} parent=1 // pred_region
      %s15 = ssub.s32 128, 128
      %16 = vsyncadd [#allocation3], %s15
      %s18 = sshll.u32 [#allocation2], 4
      %s19 = int_to_ptr.vmem [resolvable:$true] %s18
      %21 = dma.hbm_to_vmem [thread:$0]  %s0, 128, %s19, [#allocation3]
    $region5: #{tpu_custom_call.1} parent=1 // pred_fallthru
      _
    // Predicated region
    $region6: #{tpu_custom_call.1} parent=1 // pred_check
      _
    $region7: #{tpu_custom_call.1} parent=1 // pred_check_branch
      %23 = sbr.rel (0) target = $region9
    $region8: #{tpu_custom_call.1} parent=1 // pred_region
      %s25 = ssub.s32 128, 128
      %26 = vsyncadd [#allocation6], %s25
      %s28 = sshll.u32 [#allocation5], 4
      %s29 = int_to_ptr.vmem [resolvable:$true] %s28
      %31 = dma.hbm_to_vmem [thread:$0]  %s1, 128, %s29, [#allocation6]
    $region9: #{tpu_custom_call.1} parent=1 // pred_fallthru
      _
    // Predicated region
    $region10: #{tpu_custom_call.1} parent=1 // pred_check
      _
    $region11: #{tpu_custom_call.1} parent=1 // pred_check_branch
      %33 = sbr.rel (0) target = $region13
    $region12: #{tpu_custom_call.1} parent=1 // pred_region
      %s35 = ssub.s32 128, 128
      %36 = vsyncadd [#allocation6], %s35
      %s38 = sshll.u32 [#allocation7], 4
      %s39 = int_to_ptr.vmem [resolvable:$true] %s38
      %41 = dma.hbm_to_vmem [thread:$0]  %s2, 128, %s39, [#allocation6]
    $region13: #{tpu_custom_call.1} parent=1 // pred_fallthru
      _
    // Predicated region
    $region14: #{tpu_custom_call.1} parent=1 // pred_check
      _
    $region15: #{tpu_custom_call.1} parent=1 // pred_check_branch
      %43 = sbr.rel (0) target = $region17
    $region16: #{tpu_custom_call.1} parent=1 // pred_region
      _
    $region17: #{tpu_custom_call.1} parent=1 // pred_fallthru
      _
    // Predicated region
    $region18: #{tpu_custom_call.1} parent=1 // pred_check
      _
    $region19: #{tpu_custom_call.1} parent=1 // pred_check_branch
      %45 = sbr.rel (0) target = $region21
    $region20: #{tpu_custom_call.1} parent=1 // pred_region
      %46 = dma.done [#allocation3], 128
    $region21: #{tpu_custom_call.1} parent=1 // pred_fallthru
      _
    // Predicated region
    $region22: #{tpu_custom_call.1} parent=1 // pred_check
      _
    $region23: #{tpu_custom_call.1} parent=1 // pred_check_branch
      %48 = sbr.rel (0) target = $region25
    $region24: #{tpu_custom_call.1} parent=1 // pred_region
      %49 = dma.done [#allocation6], 128
    $region25: #{tpu_custom_call.1} parent=1 // pred_fallthru
      _
    // Predicated region
    $region26: #{tpu_custom_call.1} parent=1 // pred_check
      _
    $region27: #{tpu_custom_call.1} parent=1 // pred_check_branch
      %51 = sbr.rel (0) target = $region29
    $region28: #{tpu_custom_call.1} parent=1 // pred_region
      %52 = dma.done [#allocation6], 128
    $region29: #{tpu_custom_call.1} parent=1 // pred_fallthru
      _
    %p53 = scmp.eq.s32.totalorder 0, 0
    // Predicated region
    $region30: #{tpu_custom_call.1} parent=1 // pred_check
      %p54 = pneg %p53
    $region31: #{tpu_custom_call.1} parent=1 // pred_check_branch
      %56 = sbr.rel (%p54) target = $region33
    $region32: #{tpu_custom_call.1} parent=1 // pred_region
      %vm57 = vcmask 0
      %58 = vst.msk [vmem:[#allocation8] sm:$0x1] %vm57, 0.0
    $region33: #{tpu_custom_call.1} parent=1 // pred_fallthru
      _
    %v59 = vld [vmem:[#allocation2] sm:$0xff]
    %v60 = vld [vmem:[#allocation5] sm:$0xff]
    %v61 = vld [vmem:[#allocation7] sm:$0xff]
    %v62 = vld [vmem:[%s3] sm:$0xff]
    %v63 = vmul.f32 %v59, %v59
    %64 = vadd.xlane.f32.xlu0 %v63
    %v65 = vpop.xlane.xlu0 %64
    %v66 = vmul.f32 %v60, %v60
    %67 = vadd.xlane.f32.xlu0 %v66
    %v68 = vpop.xlane.xlu0 %67
    %v69 = vmul.f32 %v61, %v61
    %70 = vadd.xlane.f32.xlu0 %v69
    %v71 = vpop.xlane.xlu0 %70
    %v72 = vmul.f32 %v62, %v62
    %73 = vadd.xlane.f32.xlu0 %v72
    %v74 = vpop.xlane.xlu0 %73
    %v75 = vmul.f32 %v59, %v62
    %76 = vadd.xlane.f32.xlu0 %v75
    %v77 = vpop.xlane.xlu0 %76
    %v78 = vmul.f32 %v60, %v61
    %79 = vadd.xlane.f32.xlu0 %v78
    %v80 = vpop.xlane.xlu0 %79
    %v81 = vmax.f32 %v65, 1e-24
    %v82 = vrsqrt.pop %v81
    %v83 = vmul.f32 %v77, %v82
    %v84 = vmax.f32 %v74, 1e-24
    %v85 = vrsqrt.pop %v84
    %v86 = vmul.f32 %v83, %v85
    %v87 = vmax.f32 %v68, 1e-24
    %v88 = vrsqrt.pop %v87
    %v89 = vmul.f32 %v80, %v88
    %v90 = vmax.f32 %v71, 1e-24
    %v91 = vrsqrt.pop %v90
    %v92 = vmul.f32 %v89, %v91
    %v93 = vld [vmem:[#allocation8] sm:$0x1]
    %v94 = vadd.f32 %v86, %v92
    %v95 = vrot.slane %v94, 4
    %v96 = vadd.f32 %v94, %v95
    %v97 = vrot.slane %v96, 2
    %v98 = vadd.f32 %v96, %v97
    %v99 = vrot.slane %v98, 1
    %v100 = vadd.f32 %v98, %v99
    %v101 = vadd.f32 %v93, %v100
    %vm102 = vcmask 0
    %103 = vst.msk [vmem:[#allocation8] sm:$0x1] %vm102, %v101
    // Predicated region
    $region34: #{tpu_custom_call.1} parent=1 // pred_check
      %p104 = pneg %p53
    $region35: #{tpu_custom_call.1} parent=1 // pred_check_branch
      %106 = sbr.rel (%p104) target = $region37
    $region36: #{tpu_custom_call.1} parent=1 // pred_region
      %v107 = vld [vmem:[#allocation8] sm:$0x1]
      %v108 = vmul.f32 %v107, 0.125
      %v109 = vsub.f32 2.0, %v108
      %110 = vst.msk [vmem:[#allocation8] sm:$0x1] %vm102, %v109
    $region37: #{tpu_custom_call.1} parent=1 // pred_fallthru
      _
    // Predicated region
    $region38: #{tpu_custom_call.1} parent=1 // pred_check
      _
    $region39: #{tpu_custom_call.1} parent=1 // pred_check_branch
      %112 = sbr.rel (0) target = $region41
    $region40: #{tpu_custom_call.1} parent=1 // pred_region
      %s114 = ssub.s32 16, 16
      %115 = vsyncadd [#allocation4], %s114
      %s117 = sshll.u32 [#allocation8], 4
      %s118 = int_to_ptr.vmem [resolvable:$true] %s117
      %120 = dma.vmem_to_hbm [thread:$0]  %s118, 16, %s4, [#allocation4]
    $region41: #{tpu_custom_call.1} parent=1 // pred_fallthru
      _
    // Predicated region
    $region42: #{tpu_custom_call.1} parent=1 // pred_check
      _
    $region43: #{tpu_custom_call.1} parent=1 // pred_check_branch
      %122 = sbr.rel (0) target = $region45
    $region44: #{tpu_custom_call.1} parent=1 // pred_region
      %123 = dma.done [#allocation4], 16
    $region45: #{tpu_custom_call.1} parent=1 // pred_fallthru
      _
    %124 = vsyncpa [#allocation3], 1
    %125 = vsyncpa [#allocation6], 1
    %126 = vsyncpa [#allocation4], 1

</llo_original>
